<compile_context>
chip_gen: v7x
topology: tpu7x:2x2x1
jax: 0.10.0
libtpu: 0.0.40
codegen_flags: <defaults>
</compile_context>

<pallas_src>
import jax
import jax.numpy as jnp
from jax import lax
from jax.experimental import pallas as pl
from jax.experimental.pallas import tpu as pltpu


def _make_sepconv_kernel(L, Wp, KH, KW, WIN):
    def kernel(x_ref, wf_ref, o_ref):
        # x_ref : (1, Cin, Lp)        whole padded+flattened image of batch b
        # wf_ref: (Cout, KH*KW*Cin)   fused depthwise*pointwise weights (im2col order)
        # o_ref : (1, Cout, L)        one flat row-tile of the output
        h = pl.program_id(1)
        base = h * L
        if L % 128 == 0:
            base = pl.multiple_of(base, 128)
        elif L % 8 == 0:
            base = pl.multiple_of(base, 8)

        # Load the (th + KH - 1)-row halo window once; every conv tap is a
        # static lane shift of this resident value.
        xw = x_ref[0, :, pl.ds(base, WIN)]                       # (Cin, WIN)

        # im2col: stack the KH*KW shifted patches along the sublane axis and
        # run ONE MXU matmul with contraction K = KH*KW*Cin.
        patches = [xw[:, ky * Wp + kx: ky * Wp + kx + L]
                   for ky in range(KH) for kx in range(KW)]
        rhs = jnp.concatenate(patches, axis=0)                   # (KH*KW*Cin, L)
        acc = jnp.dot(wf_ref[...], rhs,
                      preferred_element_type=jnp.float32)        # (Cout, L) f32
        o_ref[0] = acc.astype(o_ref.dtype)

    return kernel


def separable_conv2d(x_nchw, dw_oihw, pw_oihw):
    """SeparableConv2d forward (matches the PyTorch module: padding=1, no bias).

    x_nchw : (B, Cin, H, W)
    dw_oihw: (Cin, 1, KH, KW)   depthwise weight (PyTorch layout)
    pw_oihw: (Cout, Cin, 1, 1)  pointwise weight (PyTorch layout)
    returns: (B, Cout, Ho, Wo)  with Ho = H + 2 - KH + 1 (== H for 3x3, pad=1)
    """
    B, Cin, H, W = x_nchw.shape
    KH, KW = int(dw_oihw.shape[2]), int(dw_oihw.shape[3])
    Cout = int(pw_oihw.shape[0])
    pad = 1  # the module hardcodes padding=1 on the depthwise conv

    Hp, Wp0 = H + 2 * pad, W + 2 * pad
    Ho, Wo = Hp - KH + 1, Wp0 - KW + 1           # == H, W for 3x3, pad=1

    # ---- lane-friendly row stride: round padded width up so flat tiles can
    #      be a multiple of 128 lanes (dense vst, aligned window loads).
    if Wp0 <= 128:
        Wp = 1
        while Wp < Wp0:
            Wp *= 2
    else:
        Wp = ((Wp0 + 127) // 128) * 128
    assert Wp >= KW - 1

    # ---- weight prep: fuse depthwise into pointwise, im2col weight layout ----
    # wf[cout, t*Cin + cin] = dw[cin, ky, kx] * pw[cout, cin],  t = ky*KW + kx
    dw = dw_oihw[:, 0, :, :].reshape(Cin, KH * KW).T.astype(jnp.float32)  # (9, Cin)
    pw = pw_oihw[:, :, 0, 0].astype(jnp.float32)                          # (Cout, Cin)
    wf = dw[None, :, :] * pw[:, None, :]                                  # (Cout, 9, Cin)
    wf_dtype = jnp.float32 if x_nchw.dtype == jnp.float32 else x_nchw.dtype
    wf = wf.reshape(Cout, KH * KW * Cin).astype(wf_dtype)
    K9 = KH * KW * Cin

    # ---- input prep: NCHW, spatial zero-pad, lane-pad width to Wp, flatten ---
    xp = jnp.pad(x_nchw, ((0, 0), (0, 0), (pad, pad), (pad, pad + (Wp - Wp0))))
    # extra Wp-long zero tail: corner taps of the last tile read just past
    # Hp*Wp; their results only feed the junk columns that are dropped below.
    x_flat = jnp.pad(xp.reshape(B, Cin, Hp * Wp), ((0, 0), (0, 0), (0, Wp)))
    Lp = x_flat.shape[-1]
    assert Hp * Wp + KW - 1 <= Lp, "halo tail too small (would read OOB in VMEM)"

    # ---- tile selection: LARGEST divisor of Ho with 128-aligned flat length --
    L_CAP = 2048  # keep acc + im2col patches within a handful of vregs
    divisors = [d for d in range(1, Ho + 1) if Ho % d == 0]
    aligned = [d for d in divisors if (d * Wp) % 128 == 0 and d * Wp <= L_CAP]
    if aligned:
        th = max(aligned)
        if B == 1:  # give megacore (v7x: 2 TCs) >= 2 parallel steps when possible
            half = [d for d in aligned if d <= Ho // 2]
            if half:
                th = max(half)
    else:
        th = Ho  # fall back: one tile per image (block == full dim, still valid)
    nh = Ho // th
    L = th * Wp
    WIN = (th + KH - 1) * Wp + (KW - 1)

    # ---- VMEM budget: double-buffered blocks + in-kernel scratch, HW-capped --
    itemsize = jnp.dtype(x_nchw.dtype).itemsize
    need = (2 * Cin * Lp * itemsize              # input block (double-buffered)
            + 2 * Cout * L * itemsize            # output block (double-buffered)
            + 2 * Cout * K9 * 4                  # fused weights
            + (K9 * L + Cout * L + Cin * WIN) * 4  # im2col RHS + acc + window
            + (1 << 20))                         # headroom
    try:
        cap = int(pltpu.get_tpu_info().vmem_capacity_bytes)
    except Exception:
        cap = 64 << 20
    vmem_limit = int(min(int(cap * 0.9), max(4 << 20, need)))
    # TODO(synk): when 2*Cin*Lp no longer fits VMEM (large images on v7x's
    # 64 MiB/TC), switch the input to h-tiled halo blocks via manual
    # pltpu.make_async_copy double-buffering instead of the whole-image block.

    kernel = _make_sepconv_kernel(L, Wp, KH, KW, WIN)

    out_flat = pl.pallas_call(
        kernel,
        out_shape=jax.ShapeDtypeStruct((B, Cout, nh * L), x_nchw.dtype),
        grid=(B, nh),
        in_specs=[
            # whole padded image of batch b; constant along h => one DMA per b
            pl.BlockSpec((1, Cin, Lp), lambda b, h: (b, 0, 0)),
            # fused weights, resident across the whole grid
            pl.BlockSpec((Cout, K9), lambda b, h: (0, 0)),
        ],
        out_specs=pl.BlockSpec((1, Cout, L), lambda b, h: (b, 0, h)),
        compiler_params=pltpu.CompilerParams(
            dimension_semantics=("parallel", "parallel"),
            vmem_limit_bytes=vmem_limit),
    )(x_flat, wf)

    # ---- un-flatten: pure reshape (no transpose / extra HBM pass), then drop
    #      the lane-pad columns.
    out = out_flat.reshape(B, Cout, Ho, Wp)
    return out[:, :, :, :Wo]


def _reference(x_nchw, dw_oihw, pw_oihw):
    """Pure-JAX reference using lax.conv (matches PyTorch semantics)."""
    Cin = x_nchw.shape[1]
    dn = ("NCHW", "OIHW", "NCHW")
    y = lax.conv_general_dilated(x_nchw, dw_oihw, (1, 1), ((1, 1), (1, 1)),
                                 feature_group_count=Cin, dimension_numbers=dn)
    y = lax.conv_general_dilated(y, pw_oihw, (1, 1), ((0, 0), (0, 0)),
                                 dimension_numbers=dn)
    return y


if __name__ == "__main__":
    B, Cin, Cout, H, W, K = 2, 4, 8, 16, 16, 3

    key = jax.random.PRNGKey(0)
    kx_, kdw, kpw = jax.random.split(key, 3)
    x = jax.random.normal(kx_, (B, Cin, H, W), dtype=jnp.float32)
    dw_weight = jax.random.normal(kdw, (Cin, 1, K, K), dtype=jnp.float32) * 0.1
    pw_weight = jax.random.normal(kpw, (Cout, Cin, 1, 1), dtype=jnp.float32) * 0.1

    out = separable_conv2d(x, dw_weight, pw_weight)
    out = jax.block_until_ready(out)

    ref = jax.block_until_ready(_reference(x, dw_weight, pw_weight))
    assert out.shape == (B, Cout, H, W), out.shape
    max_err = float(jnp.max(jnp.abs(out - ref)))
    assert jnp.allclose(out, ref, atol=1e-4, rtol=1e-4), max_err

    print("KERNEL_OK")
</pallas_src>

<mosaic_0001>
module attributes {stable_mosaic.version = 11 : i64} {
  func.func @kernel(%arg0: i32, %arg1: i32, %arg2: memref<1x4x608xf32, #tpu.memory_space<vmem>>, %arg3: memref<8x36xf32, #tpu.memory_space<vmem>>, %arg4: memref<1x8x512xf32, #tpu.memory_space<vmem>>) attributes {dimension_semantics = [#tpu.dimension_semantics<parallel>, #tpu.dimension_semantics<parallel>], iteration_bounds = array<i64: 2, 1>, scalar_prefetch = 0 : i64, scratch_operands = 0 : i64, tpu.core_type = #tpu.core_type<tc>, window_params = [{transform_indices = @transform_0, window_bounds = array<i64: 1, 4, 608>}, {pipeline_mode = #tpu.pipeline_mode<synchronous>, transform_indices = @transform_1, window_bounds = array<i64: 8, 36>}, {transform_indices = @transform_2, window_bounds = array<i64: 1, 8, 512>}]} {
    %c512_i32 = arith.constant 512 : i32
    %0 = arith.muli %arg1, %c512_i32 : i32
    %1 = tpu.assume_multiple %0, 128 : i32
    %c0 = arith.constant 0 : index
    %c0_0 = arith.constant 0 : index
    %2 = arith.index_cast %1 : i32 to index
    %3 = vector.load %arg2[%c0, %c0_0, %2] : memref<1x4x608xf32, #tpu.memory_space<vmem>>, vector<1x4x578xf32>
    %4 = vector.shape_cast %3 : vector<1x4x578xf32> to vector<4x578xf32>
    %5 = vector.extract_strided_slice %4 {offsets = [0, 0], sizes = [4, 512], strides = [1, 1]} : vector<4x578xf32> to vector<4x512xf32>
    %6 = vector.extract_strided_slice %4 {offsets = [0, 1], sizes = [4, 512], strides = [1, 1]} : vector<4x578xf32> to vector<4x512xf32>
    %7 = vector.extract_strided_slice %4 {offsets = [0, 2], sizes = [4, 512], strides = [1, 1]} : vector<4x578xf32> to vector<4x512xf32>
    %8 = vector.extract_strided_slice %4 {offsets = [0, 32], sizes = [4, 512], strides = [1, 1]} : vector<4x578xf32> to vector<4x512xf32>
    %9 = vector.extract_strided_slice %4 {offsets = [0, 33], sizes = [4, 512], strides = [1, 1]} : vector<4x578xf32> to vector<4x512xf32>
    %10 = vector.extract_strided_slice %4 {offsets = [0, 34], sizes = [4, 512], strides = [1, 1]} : vector<4x578xf32> to vector<4x512xf32>
    %11 = vector.extract_strided_slice %4 {offsets = [0, 64], sizes = [4, 512], strides = [1, 1]} : vector<4x578xf32> to vector<4x512xf32>
    %12 = vector.extract_strided_slice %4 {offsets = [0, 65], sizes = [4, 512], strides = [1, 1]} : vector<4x578xf32> to vector<4x512xf32>
    %13 = vector.extract_strided_slice %4 {offsets = [0, 66], sizes = [4, 512], strides = [1, 1]} : vector<4x578xf32> to vector<4x512xf32>
    %14 = tpu.concatenate %5, %6, %7, %8, %9, %10, %11, %12, %13 in 0 : vector<4x512xf32>, vector<4x512xf32>, vector<4x512xf32>, vector<4x512xf32>, vector<4x512xf32>, vector<4x512xf32>, vector<4x512xf32>, vector<4x512xf32>, vector<4x512xf32> -> vector<36x512xf32>
    %c0_1 = arith.constant 0 : index
    %c0_2 = arith.constant 0 : index
    %15 = vector.load %arg3[%c0_1, %c0_2] : memref<8x36xf32, #tpu.memory_space<vmem>>, vector<8x36xf32>
    %cst = arith.constant dense<0.000000e+00> : vector<8x512xf32>
    %16 = tpu.matmul %15, %14, %cst {dimension_numbers = #tpu.dot_dimension_numbers<[1], [0], [0], [1], [0, 0, 1, 1], [], []>} : vector<8x36xf32>, vector<36x512xf32>, vector<8x512xf32> -> vector<8x512xf32>
    %c0_3 = arith.constant 0 : index
    %c0_4 = arith.constant 0 : index
    %c0_5 = arith.constant 0 : index
    %17 = vector.load %arg4[%c0_3, %c0_4, %c0_5] : memref<1x8x512xf32, #tpu.memory_space<vmem>>, vector<1x8x512xf32>
    %18 = vector.shape_cast %17 : vector<1x8x512xf32> to vector<8x512xf32>
    %19 = vector.shape_cast %16 : vector<8x512xf32> to vector<1x8x512xf32>
    tpu.vector_store %arg4[%c0_3, %c0_4, %c0_5], %19 {strides = array<i32>} : memref<1x8x512xf32, #tpu.memory_space<vmem>>, vector<1x8x512xf32>,
    return
  }
  func.func @transform_0(%arg0: i32, %arg1: i32) -> (i32, i32, i32) {
    %c0_i32 = arith.constant 0 : i32
    %c0_i32_0 = arith.constant 0 : i32
    %c0_i32_1 = arith.constant 0 : i32
    return %arg0, %c0_i32, %c0_i32_0 : i32, i32, i32
  }
  func.func @transform_1(%arg0: i32, %arg1: i32) -> (i32, i32) {
    %c0_i32 = arith.constant 0 : i32
    %c0_i32_0 = arith.constant 0 : i32
    %c0_i32_1 = arith.constant 0 : i32
    return %c0_i32, %c0_i32_0 : i32, i32
  }
  func.func @transform_2(%arg0: i32, %arg1: i32) -> (i32, i32, i32) {
    %c0_i32 = arith.constant 0 : i32
    %c0_i32_0 = arith.constant 0 : i32
    return %arg0, %c0_i32, %arg1 : i32, i32, i32
  }
}

</mosaic_0001>

<llo_original>
// kernel: tpu_custom_call.1
$region0: #{tpu_custom_call.1}
  #allocation0 [shape = 'u32[]', space=smem, size = 0x4, offset = 0x4, fixed_abs, tag = 'smem constant byte address 0x4 - core index']
  #allocation1 [shape = 'u32[144,128]{1,0:T(1,128)}', space=vmem, size = 0x12000, scoped, tag = 'internal scratch']
  %s0 = inlined_call_operand.hbm [shape: f32[2,4,608], index: 0, kind: input, shape index: {}]
  %s1 = inlined_call_operand.hbm [shape: f32[8,36], index: 1, kind: input, shape index: {}]
  %s2 = inlined_call_operand.hbm [shape: f32[2,8,512], index: 2, kind: output, shape index: {}]
  %s3 = sld [smem:[#allocation0]]
  $region49: #{tpu_custom_call.1} parent=0
    _
  %s5 = ssub.s32 1, %s3
  %s6 = scalar_select 0, %s5, %s3
  $region1: #{tpu_custom_call.1} parent=0
    #allocation2 [shape = 'u8[20480]{0}', space=vmem, size = 0x5000, scoped, tag = 'input window, operand 0']
    #allocation3 [shape = 's32[2]{0}', space=sflag, size = 0x8, scoped, tag = 'scoped memory for tpu_custom_call.1']
    #allocation4 [shape = 's32[2]{0}', space=sflag, size = 0x8, scoped, tag = 'scoped memory for tpu_custom_call.1']
    #allocation5 [shape = 'u8[4096]{0}', space=vmem, size = 0x1000, scoped, tag = 'input window, operand 1, single buffered']
    #allocation6 [shape = 's32[1]{0}', space=sflag, size = 0x4, scoped, tag = 'scoped memory for tpu_custom_call.1']
    #allocation7 [shape = 'u8[32768]{0}', space=vmem, size = 0x8000, scoped, tag = 'output window, operand 0']
    %7 = vsyncpa [#allocation3], 0
    %s8 = scalar_lea.sflag [#allocation3], 1
    %9 = vsyncpa %s8, 0
    %10 = vsyncpa [#allocation6], 0
    %11 = vsyncpa [#allocation4], 0
    %s12 = scalar_lea.sflag [#allocation4], 1
    %13 = vsyncpa %s12, 0
    loop: start=0, step=1, limit=4
    $region2: #{tpu_custom_call.1} parent=1 // loop_pre_header
      _
    $region3: #{tpu_custom_call.1} parent=1 // loop_header
      %s15 = sphi 0, %s19
      %p16 = scmp.ge.s32.totalorder %s15, 4
      %s22 = sphi 0, %s34
      %s23 = sphi 0, %s30
      %s24 = sphi 0, %s22
      %s25 = sphi 0, %s23
      %s26 = sphi 0, %s24
      %s27 = sphi 0, %s25
      %s37 = sphi 0, %s39
      %s40 = sphi 0, %s37
      %s41 = sphi 0, %s40
      %s57 = sphi 0, %s41
      %s61 = sphi 0, %s61
      %s63 = sphi 0, %s61
      %s64 = sphi 0, %s63
      %s78 = sphi 0, %s64
      %s86 = sphi 0, %s88
      %s89 = sphi 0, %s86
      %s90 = sphi 0, %s89
      %s106 = sphi 0, %s90
    $region4: #{tpu_custom_call.1} parent=1 // loop_header_branch
      %18 = sbr.rel (%p16) target = $region8
    $region5: #{tpu_custom_call.1} parent=1 // loop_body
      %s20 = ssub.s32 %s15, 1
      %s21 = ssub.s32 %s15, 2
      %s28 = sadd.s32 1, %s23
      %p29 = scmp.ge.s32.totalorder %s28, 1
      %s30 = scalar_select %p29, 0, %s28
      %s31 = sadd.s32 1, %s22
      %s32 = scalar_select %p29, %s31, %s22
      %p33 = scmp.ge.s32.totalorder %s32, 2
      %s34 = scalar_select %p33, 0, %s32
      %s35 = ssub.s32 %s22, %s34
      %p36 = scmp.eq.s32.totalorder %s35, 0
      %s38 = sadd.s32 %s37, 1
      %s39 = scalar_select %p36, %s37, %s38
      %p42 = pneg %p36
      %p43 = scmp.eq.s32.totalorder %s15, 1
      %p44 = por %p42, %p43
      %p45 = scmp.ne.s32.totalorder %s37, %s40
      %p46 = scmp.eq.s32.totalorder %s15, 0
      %p47 = por %p45, %p46
      %p48 = scmp.ne.s32.totalorder %s37, %s40
      %p49 = scmp.eq.s32.totalorder %s20, 1
      %p50 = por %p48, %p49
      %p51 = scmp.ne.s32.totalorder %s40, %s41
      %p52 = scmp.eq.s32.totalorder %s20, 0
      %p53 = por %p51, %p52
      %p54 = scmp.ne.s32.totalorder %s40, %s41
      %p55 = scmp.eq.s32.totalorder %s21, 1
      %p56 = por %p54, %p55
      %p58 = scmp.ne.s32.totalorder %s41, %s57
      %p59 = scmp.eq.s32.totalorder %s21, 0
      %p60 = por %p58, %p59
      %s62 = sadd.s32 %s61, 1
      %p65 = scmp.eq.s32.totalorder %s15, 1
      %p66 = scmp.ne.s32.totalorder %s61, %s63
      %p67 = scmp.eq.s32.totalorder %s15, 0
      %p68 = por %p66, %p67
      %p69 = scmp.ne.s32.totalorder %s61, %s63
      %p70 = scmp.eq.s32.totalorder %s20, 1
      %p71 = por %p69, %p70
      %p72 = scmp.ne.s32.totalorder %s63, %s64
      %p73 = scmp.eq.s32.totalorder %s20, 0
      %p74 = por %p72, %p73
      %p75 = scmp.ne.s32.totalorder %s63, %s64
      %p76 = scmp.eq.s32.totalorder %s21, 1
      %p77 = por %p75, %p76
      %p79 = scmp.ne.s32.totalorder %s64, %s78
      %p80 = scmp.eq.s32.totalorder %s21, 0
      %p81 = por %p79, %p80
      %s82 = ssub.s32 %s22, %s34
      %s83 = ssub.s32 %s23, %s30
      %s84 = sor.u32 %s82, %s83
      %p85 = scmp.eq.s32.totalorder %s84, 0
      %s87 = sadd.s32 %s86, 1
      %s88 = scalar_select %p85, %s86, %s87
      %p91 = pneg %p85
      %p92 = scmp.eq.s32.totalorder %s15, 1
      %p93 = por %p91, %p92
      %p94 = scmp.ne.s32.totalorder %s86, %s89
      %p95 = scmp.eq.s32.totalorder %s15, 0
      %p96 = por %p94, %p95
      %p97 = scmp.ne.s32.totalorder %s86, %s89
      %p98 = scmp.eq.s32.totalorder %s20, 1
      %p99 = por %p97, %p98
      %p100 = scmp.ne.s32.totalorder %s89, %s90
      %p101 = scmp.eq.s32.totalorder %s20, 0
      %p102 = por %p100, %p101
      %p103 = scmp.ne.s32.totalorder %s89, %s90
      %p104 = scmp.eq.s32.totalorder %s21, 1
      %p105 = por %p103, %p104
      %p107 = scmp.ne.s32.totalorder %s90, %s106
      %p108 = scmp.eq.s32.totalorder %s21, 0
      %p109 = por %p107, %p108
      %p110 = scmp.le.s32.totalorder 1, %s15
      %p111 = scmp.lt.s32.totalorder %s15, 3
      %p112 = pnand %p110, %p111
      %p113 = pneg %p112
      // Predicated region
      $region9: #{tpu_custom_call.1} parent=5 // pred_check
        _
      $region10: #{tpu_custom_call.1} parent=5 // pred_check_branch
        %115 = sbr.rel (%p112) target = $region12
      $region11: #{tpu_custom_call.1} parent=5 // pred_region
        %s116 = ssub.s32 %s15, 1
        // Predicated region
        $region13: #{tpu_custom_call.1} parent=11 // pred_check
          %p117 = pneg %p74
        $region14: #{tpu_custom_call.1} parent=11 // pred_check_branch
          %119 = sbr.rel (%p117) target = $region16
        $region15: #{tpu_custom_call.1} parent=11 // pred_region
          %s121 = ssub.s32 128, 128
          %122 = vsyncadd [#allocation6], %s121
          %s124 = sshll.u32 [#allocation5], 4
          %s125 = int_to_ptr.vmem [resolvable:$true] %s124
          %127 = dma.hbm_to_vmem [thread:$0]  %s1, 128, %s125, [#allocation6]
        $region16: #{tpu_custom_call.1} parent=11 // pred_fallthru
          _
      $region12: #{tpu_custom_call.1} parent=5 // pred_fallthru
        _
      %p128 = scmp.lt.s32.totalorder %s15, 2
      // Predicated region
      $region17: #{tpu_custom_call.1} parent=5 // pred_check
        %p129 = pneg %p128
      $region18: #{tpu_custom_call.1} parent=5 // pred_check_branch
        %131 = sbr.rel (%p129) target = $region20
      $region19: #{tpu_custom_call.1} parent=5 // pred_region
        // Predicated region
        $region21: #{tpu_custom_call.1} parent=19 // pred_check
          %p132 = pneg %p47
        $region22: #{tpu_custom_call.1} parent=19 // pred_check_branch
          %134 = sbr.rel (%p132) target = $region24
        $region23: #{tpu_custom_call.1} parent=19 // pred_region
          %s135 = sand.u32 %s37, 1
          %s136 = scalar_lea.sflag [#allocation3], %s135
          %s137 = sand.u32 %s37, 1
          %s138 = smul.addr %s137, 20
          %s139 = scalar_lea.vmem [#allocation2], %s138
          %s141 = ssub.s32 320, 320
          %142 = vsyncadd %s136, %s141
          %s143 = smul.addr %s22, 5
          %s144 = smul.addr %s143, 64
          %s145 = scalar_lea.hbm %s0, %s144
          %s147 = sshll.u32 %s139, 4
          %s148 = int_to_ptr.vmem [resolvable:$true] %s147
          %150 = dma.hbm_to_vmem [thread:$0]  %s145, 320, %s148, %s136
        $region24: #{tpu_custom_call.1} parent=19 // pred_fallthru
          _
      $region20: #{tpu_custom_call.1} parent=5 // pred_fallthru
        _
      %p151 = scmp.le.s32.totalorder 1, %s15
      %p152 = scmp.lt.s32.totalorder %s15, 3
      %p153 = pnand %p151, %p152
      %p154 = pneg %p153
      // Predicated region
      $region25: #{tpu_custom_call.1} parent=5 // pred_check
        _
      $region26: #{tpu_custom_call.1} parent=5 // pred_check_branch
        %156 = sbr.rel (%p153) target = $region28
      $region27: #{tpu_custom_call.1} parent=5 // pred_region
        %s157 = ssub.s32 %s15, 1
        %s158 = sand.u32 %s40, 1
        %s159 = scalar_lea.sflag [#allocation3], %s158
        %s160 = sand.u32 %s40, 1
        %s161 = smul.addr %s160, 20
        %s162 = scalar_lea.vmem [#allocation2], %s161
        // Predicated region
        $region29: #{tpu_custom_call.1} parent=27 // pred_check
          %p163 = pneg %p53
        $region30: #{tpu_custom_call.1} parent=27 // pred_check_branch
          %165 = sbr.rel (%p163) target = $region32
        $region31: #{tpu_custom_call.1} parent=27 // pred_region
          %166 = dma.done %s159, 320
        $region32: #{tpu_custom_call.1} parent=27 // pred_fallthru
          _
        // Predicated region
        $region33: #{tpu_custom_call.1} parent=27 // pred_check
          %p167 = pneg %p74
        $region34: #{tpu_custom_call.1} parent=27 // pred_check_branch
          %169 = sbr.rel (%p167) target = $region36
        $region35: #{tpu_custom_call.1} parent=27 // pred_region
          %170 = dma.done [#allocation6], 128
        $region36: #{tpu_custom_call.1} parent=27 // pred_fallthru
          _
        %s171 = sand.u32 %s40, 1
        %s172 = scalar_lea.sflag [#allocation3], %s171
        %s173 = sand.u32 %s40, 1
        %s174 = smul.addr %s173, 20
        %s175 = scalar_lea.vmem [#allocation2], %s174
        %p176 = pneg %p53
        %p177 = pneg %p50
        %p178 = pneg %p74
        %p179 = pneg %p71
        %p180 = pneg %p102
        %p181 = pneg %p99
        %s182 = sand.u32 %s89, 1
        %s183 = scalar_lea.sflag [#allocation4], %s182
        %s184 = sand.u32 %s89, 1
        %s185 = smul.addr %s184, 32
        %s186 = scalar_lea.vmem [#allocation7], %s185
        %s187 = smul.u32 4, %s25
        %s188 = smul.u32 %s25, 512
        %s189 = sshra.s32 %s188, 7
        %s190 = sand.u32 %s188, 127
        %s191 = smul.addr %s189, 4
        %s192 = scalar_lea.vmem %s162, %s191 [#allocation2]
        %v193 = vld [vmem:[%s192] sm:$0xff]
        %v194 = vld [vmem:[%s192 + $0x8] sm:$0xff]
        %v195 = vld [vmem:[%s192 + $0x10] sm:$0xf]
        %v198 = vcombine.high %v193, %v193
        %v199 = vcombine.high %v194, %v194
        %v203 = vcombine.low %v193, %v193
        %v204 = vcombine.low %v194, %v194
        %v205 = vcombine.low %v195, %v195
        %206 = vrot.lane.b32.xlu0 %v203, 127
        %v207 = vpop.permute.xlu0 %206
        %208 = vrot.lane.b32.xlu0 %v193, 127
        %v209 = vpop.permute.xlu0 %208
        %210 = vrot.lane.b32.xlu0 %v204, 127
        %v211 = vpop.permute.xlu0 %210
        %212 = vrot.lane.b32.xlu0 %v194, 127
        %v213 = vpop.permute.xlu0 %212
        %214 = vrot.lane.b32.xlu0 %v205, 127
        %v215 = vpop.permute.xlu0 %214
        %vm216 = vcmask 1039360
        %v217 = vsel %vm216, %v207, %v209
        %v218 = vsel %vm216, %v209, %v211
        %v219 = vsel %vm216, %v211, %v213
        %v220 = vsel %vm216, %v213, %v215
        %225 = vrot.lane.b32.xlu0 %v193, 126
        %v226 = vpop.permute.xlu0 %225
        %227 = vrot.lane.b32.xlu0 %v198, 126
        %v228 = vpop.permute.xlu0 %227
        %229 = vrot.lane.b32.xlu0 %v194, 126
        %v230 = vpop.permute.xlu0 %229
        %231 = vrot.lane.b32.xlu0 %v199, 126
        %v232 = vpop.permute.xlu0 %231
        %233 = vrot.lane.b32.xlu0 %v195, 126
        %v234 = vpop.permute.xlu0 %233
        %vm235 = vcmask 1031168
        %v236 = vsel %vm235, %v226, %v228
        %v237 = vsel %vm235, %v228, %v230
        %v238 = vsel %vm235, %v230, %v232
        %v239 = vsel %vm235, %v232, %v234
        %244 = vrot.lane.b32.xlu0 %v203, 96
        %v245 = vpop.permute.xlu0 %244
        %246 = vrot.lane.b32.xlu0 %v193, 96
        %v247 = vpop.permute.xlu0 %246
        %248 = vrot.lane.b32.xlu0 %v204, 96
        %v249 = vpop.permute.xlu0 %248
        %250 = vrot.lane.b32.xlu0 %v194, 96
        %v251 = vpop.permute.xlu0 %250
        %252 = vrot.lane.b32.xlu0 %v205, 96
        %v253 = vpop.permute.xlu0 %252
        %vm254 = vcmask 785408
        %v255 = vsel %vm254, %v245, %v247
        %v256 = vsel %vm254, %v247, %v249
        %v257 = vsel %vm254, %v249, %v251
        %v258 = vsel %vm254, %v251, %v253
        %263 = vrot.lane.b32.xlu0 %v193, 95
        %v264 = vpop.permute.xlu0 %263
        %265 = vrot.lane.b32.xlu0 %v198, 95
        %v266 = vpop.permute.xlu0 %265
        %267 = vrot.lane.b32.xlu0 %v194, 95
        %v268 = vpop.permute.xlu0 %267
        %269 = vrot.lane.b32.xlu0 %v199, 95
        %v270 = vpop.permute.xlu0 %269
        %271 = vrot.lane.b32.xlu0 %v195, 95
        %v272 = vpop.permute.xlu0 %271
        %vm273 = vcmask 777216
        %v274 = vsel %vm273, %v264, %v266
        %v275 = vsel %vm273, %v266, %v268
        %v276 = vsel %vm273, %v268, %v270
        %v277 = vsel %vm273, %v270, %v272
        %282 = vrot.lane.b32.xlu0 %v203, 94
        %v283 = vpop.permute.xlu0 %282
        %284 = vrot.lane.b32.xlu0 %v193, 94
        %v285 = vpop.permute.xlu0 %284
        %286 = vrot.lane.b32.xlu0 %v204, 94
        %v287 = vpop.permute.xlu0 %286
        %288 = vrot.lane.b32.xlu0 %v194, 94
        %v289 = vpop.permute.xlu0 %288
        %290 = vrot.lane.b32.xlu0 %v205, 94
        %v291 = vpop.permute.xlu0 %290
        %vm292 = vcmask 769024
        %v293 = vsel %vm292, %v283, %v285
        %v294 = vsel %vm292, %v285, %v287
        %v295 = vsel %vm292, %v287, %v289
        %v296 = vsel %vm292, %v289, %v291
        %301 = vrot.lane.b32.xlu0 %v193, 64
        %v302 = vpop.permute.xlu0 %301
        %303 = vrot.lane.b32.xlu0 %v198, 64
        %v304 = vpop.permute.xlu0 %303
        %305 = vrot.lane.b32.xlu0 %v194, 64
        %v306 = vpop.permute.xlu0 %305
        %307 = vrot.lane.b32.xlu0 %v199, 64
        %v308 = vpop.permute.xlu0 %307
        %309 = vrot.lane.b32.xlu0 %v195, 64
        %v310 = vpop.permute.xlu0 %309
        %vm311 = vcmask 523264
        %v312 = vsel %vm311, %v302, %v304
        %v313 = vsel %vm311, %v304, %v306
        %v314 = vsel %vm311, %v306, %v308
        %v315 = vsel %vm311, %v308, %v310
        %320 = vrot.lane.b32.xlu0 %v203, 63
        %v321 = vpop.permute.xlu0 %320
        %322 = vrot.lane.b32.xlu0 %v193, 63
        %v323 = vpop.permute.xlu0 %322
        %324 = vrot.lane.b32.xlu0 %v204, 63
        %v325 = vpop.permute.xlu0 %324
        %326 = vrot.lane.b32.xlu0 %v194, 63
        %v327 = vpop.permute.xlu0 %326
        %328 = vrot.lane.b32.xlu0 %v205, 63
        %v329 = vpop.permute.xlu0 %328
        %vm330 = vcmask 515072
        %v331 = vsel %vm330, %v321, %v323
        %v332 = vsel %vm330, %v323, %v325
        %v333 = vsel %vm330, %v325, %v327
        %v334 = vsel %vm330, %v327, %v329
        %339 = vrot.lane.b32.xlu0 %v193, 62
        %v340 = vpop.permute.xlu0 %339
        %341 = vrot.lane.b32.xlu0 %v198, 62
        %v342 = vpop.permute.xlu0 %341
        %343 = vrot.lane.b32.xlu0 %v194, 62
        %v344 = vpop.permute.xlu0 %343
        %345 = vrot.lane.b32.xlu0 %v199, 62
        %v346 = vpop.permute.xlu0 %345
        %347 = vrot.lane.b32.xlu0 %v195, 62
        %v348 = vpop.permute.xlu0 %347
        %vm349 = vcmask 506880
        %v350 = vsel %vm349, %v340, %v342
        %v351 = vsel %vm349, %v342, %v344
        %v352 = vsel %vm349, %v344, %v346
        %v353 = vsel %vm349, %v346, %v348
        %vm354 = vcmask 1043456
        %v355 = vsel %vm354, %v193, %v217
        %v356 = vsel %vm354, %v198, %v218
        %v357 = vsel %vm354, %v194, %v219
        %v358 = vsel %vm354, %v199, %v220
        %v359 = vsel %vm354, %v236, %v255
        %v360 = vsel %vm354, %v237, %v256
        %v361 = vsel %vm354, %v238, %v257
        %v362 = vsel %vm354, %v239, %v258
        %v363 = vsel %vm354, %v274, %v293
        %v364 = vsel %vm354, %v275, %v294
        %v365 = vsel %vm354, %v276, %v295
        %v366 = vsel %vm354, %v277, %v296
        %v367 = vsel %vm354, %v312, %v331
        %v368 = vsel %vm354, %v313, %v332
        %v369 = vsel %vm354, %v314, %v333
        %v370 = vsel %vm354, %v315, %v334
        %v371 = vld [vmem:[#allocation5] sm:$0xff]
        %vm372 = vcmask 293888
        %v374 = vsel %vm372, %v371, 0
        %v376 = vsel %vm354, %v350, 0
        %v378 = vsel %vm354, %v351, 0
        %v380 = vsel %vm354, %v352, 0
        %v382 = vsel %vm354, %v353, 0
        %384 = vmatprep.subr.mxu0 %v356
        %385 = vmatpush1.msra.mxu0 %v355
        %386 = vmatprep.subr.mxu0 %v360
        %387 = vmatpush1.msra.mxu0 %v359
        %388 = vmatprep.subr.mxu0 %v364
        %389 = vmatpush1.msra.mxu0 %v363
        %390 = vmatprep.subr.mxu0 %v368
        %391 = vmatpush1.msra.mxu0 %v367
        %392 = vmatprep.subr.mxu0 %v378
        %393 = vmatpush1.msra.mxu0 %v376
        %394 = vmatprep.subr.mxu0 0.0
        %395 = vmatpush1.msra.mxu0 0.0
        %396 = vmatprep.subr.mxu0 0.0
        %397 = vmatpush1.msra.mxu0 0.0
        %398 = vmatprep.subr.mxu0 0.0
        %399 = vmatpush1.msra.mxu0 0.0
        %400 = vmatprep.subr.mxu0 0.0
        %401 = vmatpush1.msra.mxu0 0.0
        %402 = vmatprep.subr.mxu0 0.0
        %403 = vmatpush1.msra.mxu0 0.0
        %404 = vmatprep.subr.mxu0 0.0
        %405 = vmatpush1.msra.mxu0 0.0
        %406 = vmatprep.subr.mxu0 0.0
        %407 = vmatpush1.msra.mxu0 0.0
        %408 = vmatprep.subr.mxu0 0.0
        %409 = vmatpush1.msra.mxu0 0.0
        %410 = vmatprep.subr.mxu0 0.0
        %411 = vmatpush1.msra.mxu0 0.0
        %412 = vmatprep.subr.mxu0 0.0
        %413 = vmatpush1.msra.mxu0 0.0
        %414 = vmatprep.subr.mxu0 0.0
        %415 = vmatpush1.msra.mxu0 0.0
        %416 = vmatprep.subr.mxu0 0.0
        %417 = vmatpush1.msra.mxu0 0.0
        %418 = vmatprep.subr.mxu0 0.0
        %419 = vmatpush1.msra.mxu0 0.0
        %420 = vmatprep.subr.mxu0 0.0
        %421 = vmatpush1.msra.mxu0 0.0
        %422 = vmatprep.subr.mxu0 0.0
        %423 = vmatpush1.msra.mxu0 0.0
        %424 = vmatprep.subr.mxu0 0.0
        %425 = vmatpush1.msra.mxu0 0.0
        %426 = vmatprep.subr.mxu0 0.0
        %427 = vmatpush1.msra.mxu0 0.0
        %428 = vmatprep.subr.mxu0 0.0
        %429 = vmatpush1.msra.mxu0 0.0
        %430 = vmatprep.subr.mxu0 0.0
        %431 = vmatpush1.msra.mxu0 0.0
        %432 = vmatprep.subr.mxu0 0.0
        %433 = vmatpush1.msra.mxu0 0.0
        %434 = vmatprep.subr.mxu0 0.0
        %435 = vmatpush1.msra.mxu0 0.0
        %436 = vmatprep.subr.mxu0 0.0
        %437 = vmatpush1.msra.mxu0 0.0
        %438 = vmatprep.subr.mxu0 0.0
        %439 = vmatpush1.msra.mxu0 0.0
        %440 = vmatprep.subr.mxu0 0.0
        %441 = vmatpush1.msra.mxu0 0.0
        %442 = vmatprep.subr.mxu0 0.0
        %443 = vmatpush1.msra.mxu0 0.0
        %444 = vmatprep.subr.mxu0 0.0
        %445 = vmatpush1.msra.mxu0 0.0
        %446 = vmatprep.subr.mxu0 0.0
        %447 = vmatpush1.msra.mxu0 0.0
        %448 = vmatprep.mubr.f32.mxu0 0.0
        %449 = vmatmul.mubr.f32.gmra.mrb[0].mxu0 %v374
        %v450 = vpop.f32.mrb[0].mxu0
        %v451 = vadd.f32 0.0, %v450
        %v452 = vpop.f32.mrb[0].mxu0
        %v453 = vadd.f32 0.0, %v452
        %454 = vdwg.mxu0
        %455 = vmatprep.subr.mxu0 %v358
        %456 = vmatpush1.msra.mxu0 %v357
        %457 = vmatprep.subr.mxu0 %v362
        %458 = vmatpush1.msra.mxu0 %v361
        %459 = vmatprep.subr.mxu0 %v366
        %460 = vmatpush1.msra.mxu0 %v365
        %461 = vmatprep.subr.mxu0 %v370
        %462 = vmatpush1.msra.mxu0 %v369
        %463 = vmatprep.subr.mxu0 %v382
        %464 = vmatpush1.msra.mxu0 %v380
        %465 = vmatprep.subr.mxu0 0.0
        %466 = vmatpush1.msra.mxu0 0.0
        %467 = vmatprep.subr.mxu0 0.0
        %468 = vmatpush1.msra.mxu0 0.0
        %469 = vmatprep.subr.mxu0 0.0
        %470 = vmatpush1.msra.mxu0 0.0
        %471 = vmatprep.subr.mxu0 0.0
        %472 = vmatpush1.msra.mxu0 0.0
        %473 = vmatprep.subr.mxu0 0.0
        %474 = vmatpush1.msra.mxu0 0.0
        %475 = vmatprep.subr.mxu0 0.0
        %476 = vmatpush1.msra.mxu0 0.0
        %477 = vmatprep.subr.mxu0 0.0
        %478 = vmatpush1.msra.mxu0 0.0
        %479 = vmatprep.subr.mxu0 0.0
        %480 = vmatpush1.msra.mxu0 0.0
        %481 = vmatprep.subr.mxu0 0.0
        %482 = vmatpush1.msra.mxu0 0.0
        %483 = vmatprep.subr.mxu0 0.0
        %484 = vmatpush1.msra.mxu0 0.0
        %485 = vmatprep.subr.mxu0 0.0
        %486 = vmatpush1.msra.mxu0 0.0
        %487 = vmatprep.subr.mxu0 0.0
        %488 = vmatpush1.msra.mxu0 0.0
        %489 = vmatprep.subr.mxu0 0.0
        %490 = vmatpush1.msra.mxu0 0.0
        %491 = vmatprep.subr.mxu0 0.0
        %492 = vmatpush1.msra.mxu0 0.0
        %493 = vmatprep.subr.mxu0 0.0
        %494 = vmatpush1.msra.mxu0 0.0
        %495 = vmatprep.subr.mxu0 0.0
        %496 = vmatpush1.msra.mxu0 0.0
        %497 = vmatprep.subr.mxu0 0.0
        %498 = vmatpush1.msra.mxu0 0.0
        %499 = vmatprep.subr.mxu0 0.0
        %500 = vmatpush1.msra.mxu0 0.0
        %501 = vmatprep.subr.mxu0 0.0
        %502 = vmatpush1.msra.mxu0 0.0
        %503 = vmatprep.subr.mxu0 0.0
        %504 = vmatpush1.msra.mxu0 0.0
        %505 = vmatprep.subr.mxu0 0.0
        %506 = vmatpush1.msra.mxu0 0.0
        %507 = vmatprep.subr.mxu0 0.0
        %508 = vmatpush1.msra.mxu0 0.0
        %509 = vmatprep.subr.mxu0 0.0
        %510 = vmatpush1.msra.mxu0 0.0
        %511 = vmatprep.subr.mxu0 0.0
        %512 = vmatpush1.msra.mxu0 0.0
        %513 = vmatprep.subr.mxu0 0.0
        %514 = vmatpush1.msra.mxu0 0.0
        %515 = vmatprep.subr.mxu0 0.0
        %516 = vmatpush1.msra.mxu0 0.0
        %517 = vmatprep.subr.mxu0 0.0
        %518 = vmatpush1.msra.mxu0 0.0
        %519 = vmatprep.mubr.f32.mxu0 0.0
        %520 = vmatmul.mubr.f32.gmra.mrb[0].mxu0 %v374
        %v521 = vpop.f32.mrb[0].mxu0
        %v522 = vadd.f32 0.0, %v521
        %v523 = vpop.f32.mrb[0].mxu0
        %v524 = vadd.f32 0.0, %v523
        %525 = vdwg.mxu0
        %526 = vst [vmem:[%s186] sm:$0xff] %v451
        %527 = vst [vmem:[%s186 + $0x8] sm:$0xff] %v453
        %528 = vst [vmem:[%s186 + $0x10] sm:$0xff] %v522
        %529 = vst [vmem:[%s186 + $0x18] sm:$0xff] %v524
        %s530 = sand.u32 %s89, 1
        %s531 = scalar_lea.sflag [#allocation4], %s530
        %s532 = sand.u32 %s89, 1
        %s533 = smul.addr %s532, 32
        %s534 = scalar_lea.vmem [#allocation7], %s533
        // Predicated region
        $region37: #{tpu_custom_call.1} parent=27 // pred_check
          %p535 = pneg %p99
        $region38: #{tpu_custom_call.1} parent=27 // pred_check_branch
          %537 = sbr.rel (%p535) target = $region40
        $region39: #{tpu_custom_call.1} parent=27 // pred_region
          %s538 = smul.u32 4, %s25
          %s540 = ssub.s32 512, 512
          %541 = vsyncadd %s531, %s540
          %s542 = smul.addr %s24, 4
          %s543 = sadd.s32 %s538, %s542
          %s544 = smul.addr %s543, 128
          %s545 = scalar_lea.hbm %s2, %s544
          %s547 = sshll.u32 %s534, 4
          %s548 = int_to_ptr.vmem [resolvable:$true] %s547
          %550 = dma.vmem_to_hbm [thread:$0]  %s548, 512, %s545, %s531
        $region40: #{tpu_custom_call.1} parent=27 // pred_fallthru
          _
      $region28: #{tpu_custom_call.1} parent=5 // pred_fallthru
        _
      %p551 = scmp.le.s32.totalorder 2, %s15
      // Predicated region
      $region41: #{tpu_custom_call.1} parent=5 // pred_check
        %p552 = pneg %p551
      $region42: #{tpu_custom_call.1} parent=5 // pred_check_branch
        %554 = sbr.rel (%p552) target = $region44
      $region43: #{tpu_custom_call.1} parent=5 // pred_region
        %s555 = ssub.s32 %s15, 2
        // Predicated region
        $region45: #{tpu_custom_call.1} parent=43 // pred_check
          %p556 = pneg %p105
        $region46: #{tpu_custom_call.1} parent=43 // pred_check_branch
          %558 = sbr.rel (%p556) target = $region48
        $region47: #{tpu_custom_call.1} parent=43 // pred_region
          %s559 = sand.u32 %s90, 1
          %s560 = scalar_lea.sflag [#allocation4], %s559
          %s561 = sand.u32 %s90, 1
          %s562 = smul.addr %s561, 32
          %s563 = scalar_lea.vmem [#allocation7], %s562
          %564 = dma.done %s560, 512
        $region48: #{tpu_custom_call.1} parent=43 // pred_fallthru
          _
      $region44: #{tpu_custom_call.1} parent=5 // pred_fallthru
        _
    $region6: #{tpu_custom_call.1} parent=1 // loop_footer
      %s19 = sadd.s32 1, %s15
    $region7: #{tpu_custom_call.1} parent=1 // loop_footer_branch
      %14 = sbr.rel target = $region3
    $region8: #{tpu_custom_call.1} parent=1 // loop_exit
      _
    %565 = vsyncpa [#allocation3], 1
    %s566 = scalar_lea.sflag [#allocation3], 1
    %567 = vsyncpa %s566, 1
    %568 = vsyncpa [#allocation6], 1
    %569 = vsyncpa [#allocation4], 1
    %s570 = scalar_lea.sflag [#allocation4], 1
    %571 = vsyncpa %s570, 1

</llo_original>
